<compile_context>
chip_gen: v7x
topology: tpu7x:2x2x1
jax: 0.10.0
libtpu: 0.0.40
codegen_flags: <defaults>
</compile_context>

<pallas_src>
import functools

import jax
import jax.numpy as jnp
import numpy as np
from jax.experimental import pallas as pl
from jax.experimental.pallas import tpu as pltpu


# ---------------------------------------------------------------------------
# Pallas kernel: build the H-shifted K-concat in VMEM, then ONE matmul + bias.
# ---------------------------------------------------------------------------
def _convcc5_kernel(x_ref, w_ref, b_ref, o_ref, xcat_ref):
    # x_ref   : (Nt, H, Lin)    raw lane-dense activations (Lin = W*Cin)
    # w_ref   : (5*Lin, Lout)   concatenated band weights (compute dtype)
    # b_ref   : (1, Lout)       effective bias (f32)
    # o_ref   : (Nt, H, Lout)   lane-dense output slab (Lout = W*Co)
    # xcat_ref: (Nt*H, 5*Lin)   VMEM scratch: im2col over the H axis only
    nt, h, lin = x_ref.shape
    cdt = xcat_ref.dtype

    # Zero the scratch every step: the un-written rows are exactly the H-halo
    # zeros, and re-zeroing each step is safe under megacore grid sharding
    # (each TensorCore owns its own scratch).  Cheap: one dense vst sweep.
    xcat_ref[...] = jnp.zeros_like(xcat_ref)

    # X_cat[n*H + y, dh*Lin + l] = x[n, y + dh - 2, l]  (zero outside rows).
    # All slice bounds are static Python ints -> plain vld/vst copies done
    # exactly once, instead of five sublane-misaligned matmul operands.
    for n in range(nt):
        for dh in range(5):
            lo = max(0, 2 - dh)
            hi = min(h, h + 2 - dh)
            cnt = hi - lo
            src = lo + dh - 2
            xcat_ref[pl.ds(n * h + lo, cnt), pl.ds(dh * lin, lin)] = (
                x_ref[n, pl.ds(src, cnt), :].astype(cdt))

    # Single MXU pass (K = 5*Lin), f32 accumulation, single bias add.
    acc = jnp.dot(xcat_ref[...], w_ref[...], preferred_element_type=jnp.float32)
    out = acc + b_ref[...]                         # (Nt*H, Lout) + (1, Lout)
    o_ref[...] = out.reshape(nt, h, -1).astype(o_ref.dtype)


# ---------------------------------------------------------------------------
# Weight folding: collapse the whole linear module into 9 cross taps + 1 bias.
# ---------------------------------------------------------------------------
def _fold_effective_weights(params):
    """Returns
      w_row: (5, Cin, Co) taps at spatial offsets (0, dw-2); centre tap carries
             ALL centre contributions (both 1x1 convs + both branch centres)
      w_col: (5, Cin, Co) taps at spatial offsets (dh-2, 0); centre tap is 0
      b_eff: (Co,)        effective bias
    """
    f32 = lambda k: jnp.asarray(params[k], jnp.float32)
    W15 = f32("w15")[:, :, 0, :]      # (Co, Cin, 5)
    W51 = f32("w51")[:, :, :, 0]      # (Co, Cin, 5)
    W1 = f32("w1")[:, :, 0, 0]        # (Co, Cin)
    W13 = f32("w13")[:, :, 0, :]      # (Co, Cin, 3)
    W31 = f32("w31")[:, :, :, 0]      # (Co, Cin, 3)
    W1c3 = f32("w1c3")[:, :, 0, 0]    # (Co, Cin)
    Wo3 = f32("wo3")[:, :, 0, 0]      # (Co, Co)
    Wo5 = f32("wo5")[:, :, 0, 0]      # (Co, Co)
    b15, b51, b1 = f32("b15"), f32("b51"), f32("b1")
    b13, b31, b1c3 = f32("b13"), f32("b31"), f32("b1c3")
    bo3, bo5 = f32("bo3"), f32("bo5")

    # Tap weights in "s" space (the sum feeding ConvCC5.outc), (tap, Cin, Co).
    s_row = jnp.transpose(W15, (2, 1, 0))                       # conv15
    s_col = jnp.transpose(W51, (2, 1, 0))                       # conv51
    # ConvCC3 branch routed through its own 1x1 outc (Wo3).
    a3_row = jnp.transpose(W13, (2, 1, 0))                      # (3, Cin, Co)
    a3_col = jnp.transpose(W31, (2, 1, 0))
    s_row = s_row.at[1:4].add(jnp.einsum("kiq,oq->kio", a3_row, Wo3))
    s_col = s_col.at[1:4].add(jnp.einsum("kiq,oq->kio", a3_col, Wo3))
    # Centre 1x1 branches: ConvCC5.conv and ConvCC3.conv (through Wo3).
    centre = W1.T + jnp.einsum("qi,oq->io", W1c3, Wo3)          # (Cin, Co)
    # Fold the column-branch centre tap into the row band's centre.
    s_row = s_row.at[2].add(centre + s_col[2])
    s_col = s_col.at[2].set(0.0)

    # Apply ConvCC5.outc (Wo5).
    w_row = jnp.einsum("kio,po->kip", s_row, Wo5)               # (5, Cin, Co)
    w_col = jnp.einsum("kio,po->kip", s_col, Wo5)               # (5, Cin, Co)

    b_s = b15 + b51 + b1 + bo3 + Wo3 @ (b13 + b31 + b1c3)
    b_eff = bo5 + Wo5 @ b_s
    return w_row, w_col, b_eff


def _build_cat_weight(w_row, w_col, W, Cin, Co):
    """(5*W*Cin, W*Co) concatenated band weight for the single-matmul form.

    Band dh (vertical offset dh-2) maps input row y+dh-2 (lane-dense W*Cin)
    onto output row y (lane-dense W*Co).  W zero-padding is folded into the
    band itself: out-of-range horizontal taps are simply absent, so no column
    halo is needed on the activations.  Band dh=2 carries all 5 horizontal
    taps; the other bands carry only the vertical (dw=0) tap.
    """
    lane_in, lane_out = W * Cin, W * Co
    dw = jnp.arange(5)[:, None, None]
    wi = jnp.arange(W)[None, :, None]
    wo = jnp.arange(W)[None, None, :]
    shift = (wi == wo + dw - 2).astype(jnp.float32)              # (5, W, W)
    band_mid = jnp.einsum("dqw,dip->qiwp", shift, w_row)         # (W,Cin,W,Co)
    band_off = jnp.einsum("qw,dip->dqiwp", shift[2], w_col)      # (5,W,Cin,W,Co)
    bands = band_off.at[2].set(band_mid)
    return bands.reshape(5 * lane_in, lane_out)


def _pick_images_per_step(n, h, target_rows=256):
    """Largest divisor d of n with d*h <= target_rows (MXU M target), preferring
    an even number of grid steps so both v7x TensorCores stay balanced."""
    best, best_key = 1, (False, 0)
    for d in range(1, n + 1):
        if n % d:
            continue
        rows = d * h
        if d > 1 and rows > target_rows:
            continue
        key = ((n // d) % 2 == 0, rows)
        if key > best_key:
            best, best_key = d, key
    return best


# ---------------------------------------------------------------------------
# NHWC entry point (preferred: no HBM-side transpose / pad passes).
# ---------------------------------------------------------------------------
def convcc5_pallas_nhwc(x_nhwc, params, *, compute_dtype=jnp.bfloat16,
                        out_dtype=None):
    """Fused ConvCC5 forward, NHWC in / NHWC out."""
    N, H, W, Cin = x_nhwc.shape
    Co = params["wo5"].shape[0]
    out_dtype = x_nhwc.dtype if out_dtype is None else out_dtype
    lane_in = W * Cin
    lane_out = W * Co            # demo: 16*8 = 128 -> unmasked 128-lane stores

    # One-time weight folding (tiny tensors, f32), then cast for the MXU.
    w_row, w_col, b_eff = _fold_effective_weights(params)
    w_cat = _build_cat_weight(w_row, w_col, W, Cin, Co).astype(compute_dtype)
    b_flat = jnp.tile(b_eff, W).reshape(1, lane_out).astype(jnp.float32)

    # Free metadata reshape (no HBM pass, no padding).
    x = x_nhwc.reshape(N, H, lane_in)

    nt = _pick_images_per_step(N, H)
    grid = (N // nt,)

    # Explicit VMEM budget (review #4): double-buffered activations/outputs,
    # grid-invariant weights (counted x2 conservatively) + bias + scratch.
    itc = jnp.dtype(compute_dtype).itemsize
    vmem_bytes = (2 * w_cat.size * itc
                  + 2 * b_flat.size * 4
                  + 2 * nt * H * lane_in * x.dtype.itemsize
                  + 2 * nt * H * lane_out * jnp.dtype(out_dtype).itemsize
                  + nt * H * 5 * lane_in * itc)
    vmem_limit = int(min(64 * 1024 * 1024, max(2 * 1024 * 1024, 2 * vmem_bytes)))

    out = pl.pallas_call(
        _convcc5_kernel,
        out_shape=jax.ShapeDtypeStruct((N, H, lane_out), out_dtype),
        grid_spec=pltpu.PrefetchScalarGridSpec(
            num_scalar_prefetch=0,
            grid=grid,
            in_specs=[
                pl.BlockSpec((nt, H, lane_in), lambda i: (i, 0, 0)),
                # Grid-invariant weight/bias (constant index_map).  At demo
                # size the double-buffered copy is ~160 KB; at production tile
                # sizes single-buffer it (pipeline_mode=pl.Buffered(1)) or use
                # the Cin-on-lanes GEMM layout (see module docstring).
                pl.BlockSpec((5 * lane_in, lane_out), lambda i: (0, 0)),
                pl.BlockSpec((1, lane_out), lambda i: (0, 0)),
            ],
            out_specs=pl.BlockSpec((nt, H, lane_out), lambda i: (i, 0, 0)),
            scratch_shapes=[pltpu.VMEM((nt * H, 5 * lane_in), compute_dtype)],
        ),
        compiler_params=pltpu.CompilerParams(
            dimension_semantics=("parallel",),
            vmem_limit_bytes=vmem_limit),
    )(x, w_cat, b_flat)

    return out.reshape(N, H, W, Co)


# ---------------------------------------------------------------------------
# NCHW compatibility wrapper (matches the PyTorch module's layout).  Real
# models should stay NHWC end-to-end and call convcc5_pallas_nhwc directly to
# avoid the two extra mem-bound transpose passes (review #6).
# ---------------------------------------------------------------------------
@functools.partial(jax.jit, static_argnames=("compute_dtype", "out_dtype"))
def convcc5_pallas(x_nchw, params, *, compute_dtype=jnp.bfloat16,
                   out_dtype=None):
    x_nhwc = jnp.transpose(x_nchw, (0, 2, 3, 1))
    out = convcc5_pallas_nhwc(x_nhwc, params, compute_dtype=compute_dtype,
                              out_dtype=out_dtype)
    return jnp.transpose(out, (0, 3, 1, 2))


# ---------------------------------------------------------------------------
# Reference (plain JAX, NCHW, unfused) for correctness check
# ---------------------------------------------------------------------------
def _conv_ref(x, w, b, pad):
    y = jax.lax.conv_general_dilated(
        x, w, window_strides=(1, 1),
        padding=((pad[0], pad[0]), (pad[1], pad[1])),
        dimension_numbers=("NCHW", "OIHW", "NCHW"))
    return y + b[None, :, None, None]


def convcc5_ref(x, p):
    x15 = _conv_ref(x, p["w15"], p["b15"], (0, 2))
    x51 = _conv_ref(x, p["w51"], p["b51"], (2, 0))
    x13 = _conv_ref(x, p["w13"], p["b13"], (0, 1))
    x31 = _conv_ref(x, p["w31"], p["b31"], (1, 0))
    x1c3 = _conv_ref(x, p["w1c3"], p["b1c3"], (0, 0))
    o3 = _conv_ref(x13 + x31 + x1c3, p["wo3"], p["bo3"], (0, 0))
    x1 = _conv_ref(x, p["w1"], p["b1"], (0, 0))
    out = x15 + x51 + o3 + x1
    return _conv_ref(out, p["wo5"], p["bo5"], (0, 0))


def make_params(key, in_c, out_c):
    shapes = {
        "w15": (out_c, in_c, 1, 5), "b15": (out_c,),
        "w51": (out_c, in_c, 5, 1), "b51": (out_c,),
        "w1": (out_c, in_c, 1, 1), "b1": (out_c,),
        "w13": (out_c, in_c, 1, 3), "b13": (out_c,),
        "w31": (out_c, in_c, 3, 1), "b31": (out_c,),
        "w1c3": (out_c, in_c, 1, 1), "b1c3": (out_c,),
        "wo3": (out_c, out_c, 1, 1), "bo3": (out_c,),
        "wo5": (out_c, out_c, 1, 1), "bo5": (out_c,),
    }
    params = {}
    keys = jax.random.split(key, len(shapes))
    for k_rng, (name, shp) in zip(keys, sorted(shapes.items())):
        params[name] = 0.1 * jax.random.normal(k_rng, shp, dtype=jnp.float32)
    return params


if __name__ == "__main__":
    key = jax.random.PRNGKey(0)
    k_x, k_p = jax.random.split(key)

    N, Cin, Cout, H, W = 2, 4, 8, 16, 16
    x = jax.random.normal(k_x, (N, Cin, H, W), dtype=jnp.float32)
    params = make_params(k_p, Cin, Cout)

    ref = jax.block_until_ready(convcc5_ref(x, params))

    # Exactness check of folding + single-matmul banded formulation (f32 path).
    out_f32 = jax.block_until_ready(
        convcc5_pallas(x, params, compute_dtype=jnp.float32,
                       out_dtype=jnp.float32))
    assert out_f32.shape == (N, Cout, H, W)
    np.testing.assert_allclose(np.asarray(out_f32), np.asarray(ref),
                               rtol=2e-4, atol=2e-4)

    # Fast path: bf16 weights/activations on the MXU (f32 accumulation) and
    # bf16 writeback.  Tolerance covers bf16 input/weight/output quantization.
    out = jax.block_until_ready(
        convcc5_pallas(x, params, out_dtype=jnp.bfloat16))
    assert out.shape == (N, Cout, H, W)
    np.testing.assert_allclose(np.asarray(out.astype(jnp.float32)),
                               np.asarray(ref), rtol=2e-2, atol=2e-2)
    print("KERNEL_OK")
</pallas_src>

<mosaic_0001>
module attributes {stable_mosaic.version = 11 : i64} {
  func.func @_convcc5_kernel(%arg0: i32, %arg1: memref<1x16x64xf32, #tpu.memory_space<vmem>>, %arg2: memref<320x128xf32, #tpu.memory_space<vmem>>, %arg3: memref<1x128xf32, #tpu.memory_space<vmem>>, %arg4: memref<1x16x128xf32, #tpu.memory_space<vmem>>, %arg5: memref<16x320xf32, #tpu.memory_space<vmem>>) attributes {dimension_semantics = [#tpu.dimension_semantics<parallel>], iteration_bounds = array<i64: 2>, scalar_prefetch = 0 : i64, scratch_operands = 1 : i64, tpu.core_type = #tpu.core_type<tc>, window_params = [{transform_indices = @transform_0, window_bounds = array<i64: 1, 16, 64>}, {pipeline_mode = #tpu.pipeline_mode<synchronous>, transform_indices = @transform_1, window_bounds = array<i64: 320, 128>}, {pipeline_mode = #tpu.pipeline_mode<synchronous>, transform_indices = @transform_2, window_bounds = array<i64: 1, 128>}, {transform_indices = @transform_3, window_bounds = array<i64: 1, 16, 128>}]} {
    %cst = arith.constant 0.000000e+00 : f32
    %0 = vector.broadcast %cst : f32 to vector<16x320xf32>
    %c0 = arith.constant 0 : index
    %c0_0 = arith.constant 0 : index
    %1 = vector.load %arg5[%c0, %c0_0] : memref<16x320xf32, #tpu.memory_space<vmem>>, vector<16x320xf32>
    tpu.vector_store %arg5[%c0, %c0_0], %0 {strides = array<i32>} : memref<16x320xf32, #tpu.memory_space<vmem>>, vector<16x320xf32>,
    %c0_1 = arith.constant 0 : index
    %c0_2 = arith.constant 0 : index
    %c0_3 = arith.constant 0 : index
    %2 = vector.load %arg1[%c0_1, %c0_2, %c0_3] : memref<1x16x64xf32, #tpu.memory_space<vmem>>, vector<1x14x64xf32>
    %3 = vector.shape_cast %2 : vector<1x14x64xf32> to vector<14x64xf32>
    %c2 = arith.constant 2 : index
    %c0_4 = arith.constant 0 : index
    %4 = vector.load %arg5[%c2, %c0_4] : memref<16x320xf32, #tpu.memory_space<vmem>>, vector<14x64xf32>
    tpu.vector_store %arg5[%c2, %c0_4], %3 {strides = array<i32>} : memref<16x320xf32, #tpu.memory_space<vmem>>, vector<14x64xf32>,
    %c0_5 = arith.constant 0 : index
    %c0_6 = arith.constant 0 : index
    %c0_7 = arith.constant 0 : index
    %5 = vector.load %arg1[%c0_5, %c0_6, %c0_7] : memref<1x16x64xf32, #tpu.memory_space<vmem>>, vector<1x15x64xf32>
    %6 = vector.shape_cast %5 : vector<1x15x64xf32> to vector<15x64xf32>
    %c1 = arith.constant 1 : index
    %c64 = arith.constant 64 : index
    %7 = vector.load %arg5[%c1, %c64] : memref<16x320xf32, #tpu.memory_space<vmem>>, vector<15x64xf32>
    tpu.vector_store %arg5[%c1, %c64], %6 {strides = array<i32>} : memref<16x320xf32, #tpu.memory_space<vmem>>, vector<15x64xf32>,
    %c0_8 = arith.constant 0 : index
    %c0_9 = arith.constant 0 : index
    %c0_10 = arith.constant 0 : index
    %8 = vector.load %arg1[%c0_8, %c0_9, %c0_10] : memref<1x16x64xf32, #tpu.memory_space<vmem>>, vector<1x16x64xf32>
    %9 = vector.shape_cast %8 : vector<1x16x64xf32> to vector<16x64xf32>
    %c0_11 = arith.constant 0 : index
    %c128 = arith.constant 128 : index
    %10 = vector.load %arg5[%c0_11, %c128] : memref<16x320xf32, #tpu.memory_space<vmem>>, vector<16x64xf32>
    tpu.vector_store %arg5[%c0_11, %c128], %9 {strides = array<i32>} : memref<16x320xf32, #tpu.memory_space<vmem>>, vector<16x64xf32>,
    %c0_12 = arith.constant 0 : index
    %c1_13 = arith.constant 1 : index
    %c0_14 = arith.constant 0 : index
    %11 = vector.load %arg1[%c0_12, %c1_13, %c0_14] : memref<1x16x64xf32, #tpu.memory_space<vmem>>, vector<1x15x64xf32>
    %12 = vector.shape_cast %11 : vector<1x15x64xf32> to vector<15x64xf32>
    %c0_15 = arith.constant 0 : index
    %c192 = arith.constant 192 : index
    %13 = vector.load %arg5[%c0_15, %c192] : memref<16x320xf32, #tpu.memory_space<vmem>>, vector<15x64xf32>
    tpu.vector_store %arg5[%c0_15, %c192], %12 {strides = array<i32>} : memref<16x320xf32, #tpu.memory_space<vmem>>, vector<15x64xf32>,
    %c0_16 = arith.constant 0 : index
    %c2_17 = arith.constant 2 : index
    %c0_18 = arith.constant 0 : index
    %14 = vector.load %arg1[%c0_16, %c2_17, %c0_18] : memref<1x16x64xf32, #tpu.memory_space<vmem>>, vector<1x14x64xf32>
    %15 = vector.shape_cast %14 : vector<1x14x64xf32> to vector<14x64xf32>
    %c0_19 = arith.constant 0 : index
    %c256 = arith.constant 256 : index
    %16 = vector.load %arg5[%c0_19, %c256] : memref<16x320xf32, #tpu.memory_space<vmem>>, vector<14x64xf32>
    tpu.vector_store %arg5[%c0_19, %c256], %15 {strides = array<i32>} : memref<16x320xf32, #tpu.memory_space<vmem>>, vector<14x64xf32>,
    %c0_20 = arith.constant 0 : index
    %c0_21 = arith.constant 0 : index
    %17 = vector.load %arg5[%c0_20, %c0_21] : memref<16x320xf32, #tpu.memory_space<vmem>>, vector<16x320xf32>
    %c0_22 = arith.constant 0 : index
    %c0_23 = arith.constant 0 : index
    %18 = vector.load %arg2[%c0_22, %c0_23] : memref<320x128xf32, #tpu.memory_space<vmem>>, vector<320x128xf32>
    %cst_24 = arith.constant dense<0.000000e+00> : vector<16x128xf32>
    %19 = tpu.matmul %17, %18, %cst_24 {dimension_numbers = #tpu.dot_dimension_numbers<[1], [0], [0], [1], [0, 0, 1, 1], [], []>} : vector<16x320xf32>, vector<320x128xf32>, vector<16x128xf32> -> vector<16x128xf32>
    %c0_25 = arith.constant 0 : index
    %c0_26 = arith.constant 0 : index
    %20 = vector.load %arg3[%c0_25, %c0_26] : memref<1x128xf32, #tpu.memory_space<vmem>>, vector<1x128xf32>
    %21 = vector.broadcast %20 : vector<1x128xf32> to vector<16x128xf32>
    %22 = arith.addf %19, %21 : vector<16x128xf32>
    %23 = vector.shape_cast %22 : vector<16x128xf32> to vector<1x16x128xf32>
    %c0_27 = arith.constant 0 : index
    %c0_28 = arith.constant 0 : index
    %c0_29 = arith.constant 0 : index
    %24 = vector.load %arg4[%c0_27, %c0_28, %c0_29] : memref<1x16x128xf32, #tpu.memory_space<vmem>>, vector<1x16x128xf32>
    tpu.vector_store %arg4[%c0_27, %c0_28, %c0_29], %23 {strides = array<i32>} : memref<1x16x128xf32, #tpu.memory_space<vmem>>, vector<1x16x128xf32>,
    return
  }
  func.func @transform_0(%arg0: i32) -> (i32, i32, i32) {
    %c0_i32 = arith.constant 0 : i32
    %c0_i32_0 = arith.constant 0 : i32
    %c0_i32_1 = arith.constant 0 : i32
    return %arg0, %c0_i32, %c0_i32_0 : i32, i32, i32
  }
  func.func @transform_1(%arg0: i32) -> (i32, i32) {
    %c0_i32 = arith.constant 0 : i32
    %c0_i32_0 = arith.constant 0 : i32
    %c0_i32_1 = arith.constant 0 : i32
    return %c0_i32, %c0_i32_0 : i32, i32
  }
  func.func @transform_2(%arg0: i32) -> (i32, i32) {
    %c0_i32 = arith.constant 0 : i32
    %c0_i32_0 = arith.constant 0 : i32
    %c0_i32_1 = arith.constant 0 : i32
    return %c0_i32, %c0_i32_0 : i32, i32
  }
  func.func @transform_3(%arg0: i32) -> (i32, i32, i32) {
    %c0_i32 = arith.constant 0 : i32
    %c0_i32_0 = arith.constant 0 : i32
    %c0_i32_1 = arith.constant 0 : i32
    return %arg0, %c0_i32, %c0_i32_0 : i32, i32, i32
  }
}

</mosaic_0001>

<llo_original>
// kernel: tile.8
$region0: #{tile.8}
  #allocation0 [shape = 's32[1]{0}', space=sflag, size = 0x4, scoped, tag = 'scoped memory for tile.8']
  %s0 = inlined_call_operand.vmem [shape: f32[8], index: 0, kind: input, shape index: {}]
  %s1 = inlined_call_operand.vmem [shape: f32[16,8], index: 1, kind: output, shape index: {}]
  // Predicated region
  $region2: #{tile.8} parent=0 // pred_check
    _
  $region3: #{tile.8} parent=0 // pred_check_branch
    %3 = sbr.rel (0) target = $region5
  $region4: #{tile.8} parent=0 // pred_region
    _
  $region5: #{tile.8} parent=0 // pred_fallthru
    _
  %v4 = vld [vmem:[%s0] ss:$0 sm:$0xff]
  %5 = vst [vmem:[%s1] sm:$0xff] %v4
  %s6 = scalar_lea.vmem %s1, 8
  %7 = vst [vmem:[%s6] sm:$0xff] %v4

// kernel: tile.9
$region0: #{tile.9}
  %s0 = inlined_call_operand.vmem [shape: f32[16,8], index: 0, kind: input, shape index: {}]
  %s1 = inlined_call_operand.vmem [shape: f32[1,128], index: 1, kind: output, shape index: {}]
  $region1: #{tile.9} parent=0
    #allocation0 [shape = 'u8[4096]{0}', space=vmem, size = 0x1000, scoped, tag = 'scoped mem for output reshape']
    %v2 = vld [vmem:[%s0] sm:$0x1]
    %vm3 = vcmask 64512
    %4 = vst.msk [vmem:[#allocation0] sm:$0x1] %vm3, %v2
    %s5 = scalar_lea.vmem %s0, 15
    %v6 = vld [vmem:[%s5] sm:$0x1]
    %7 = vrot.lane.b32.xlu0 %v6, 120
    %v8 = vpop.permute.xlu0 %7
    %vm9 = vcmask 1048512
    %10 = vst.msk [vmem:[#allocation0] sm:$0x1] %vm9, %v8
    %s11 = scalar_lea.vmem %s0, 14
    %v12 = vld [vmem:[%s11] sm:$0x1]
    %13 = vrot.lane.b32.xlu0 %v12, 112
    %v14 = vpop.permute.xlu0 %13
    %vm15 = vcmask 982912
    %16 = vst.msk [vmem:[#allocation0] sm:$0x1] %vm15, %v14
    %s17 = scalar_lea.vmem %s0, 13
    %v18 = vld [vmem:[%s17] sm:$0x1]
    %19 = vrot.lane.b32.xlu0 %v18, 104
    %v20 = vpop.permute.xlu0 %19
    %vm21 = vcmask 917312
    %22 = vst.msk [vmem:[#allocation0] sm:$0x1] %vm21, %v20
    %s23 = scalar_lea.vmem %s0, 12
    %v24 = vld [vmem:[%s23] sm:$0x1]
    %25 = vrot.lane.b32.xlu0 %v24, 96
    %v26 = vpop.permute.xlu0 %25
    %vm27 = vcmask 851712
    %28 = vst.msk [vmem:[#allocation0] sm:$0x1] %vm27, %v26
    %s29 = scalar_lea.vmem %s0, 11
    %v30 = vld [vmem:[%s29] sm:$0x1]
    %31 = vrot.lane.b32.xlu0 %v30, 88
    %v32 = vpop.permute.xlu0 %31
    %vm33 = vcmask 786112
    %34 = vst.msk [vmem:[#allocation0] sm:$0x1] %vm33, %v32
    %s35 = scalar_lea.vmem %s0, 10
    %v36 = vld [vmem:[%s35] sm:$0x1]
    %37 = vrot.lane.b32.xlu0 %v36, 80
    %v38 = vpop.permute.xlu0 %37
    %vm39 = vcmask 720512
    %40 = vst.msk [vmem:[#allocation0] sm:$0x1] %vm39, %v38
    %s41 = scalar_lea.vmem %s0, 9
    %v42 = vld [vmem:[%s41] sm:$0x1]
    %43 = vrot.lane.b32.xlu0 %v42, 72
    %v44 = vpop.permute.xlu0 %43
    %vm45 = vcmask 654912
    %46 = vst.msk [vmem:[#allocation0] sm:$0x1] %vm45, %v44
    %s47 = scalar_lea.vmem %s0, 8
    %v48 = vld [vmem:[%s47] sm:$0x1]
    %49 = vrot.lane.b32.xlu0 %v48, 64
    %v50 = vpop.permute.xlu0 %49
    %vm51 = vcmask 589312
    %52 = vst.msk [vmem:[#allocation0] sm:$0x1] %vm51, %v50
    %s53 = scalar_lea.vmem %s0, 7
    %v54 = vld [vmem:[%s53] sm:$0x1]
    %55 = vrot.lane.b32.xlu0 %v54, 56
    %v56 = vpop.permute.xlu0 %55
    %vm57 = vcmask 523712
    %58 = vst.msk [vmem:[#allocation0] sm:$0x1] %vm57, %v56
    %s59 = scalar_lea.vmem %s0, 6
    %v60 = vld [vmem:[%s59] sm:$0x1]
    %61 = vrot.lane.b32.xlu0 %v60, 48
    %v62 = vpop.permute.xlu0 %61
    %vm63 = vcmask 458112
    %64 = vst.msk [vmem:[#allocation0] sm:$0x1] %vm63, %v62
    %s65 = scalar_lea.vmem %s0, 5
    %v66 = vld [vmem:[%s65] sm:$0x1]
    %67 = vrot.lane.b32.xlu0 %v66, 40
    %v68 = vpop.permute.xlu0 %67
    %vm69 = vcmask 392512
    %70 = vst.msk [vmem:[#allocation0] sm:$0x1] %vm69, %v68
    %s71 = scalar_lea.vmem %s0, 4
    %v72 = vld [vmem:[%s71] sm:$0x1]
    %73 = vrot.lane.b32.xlu0 %v72, 32
    %v74 = vpop.permute.xlu0 %73
    %vm75 = vcmask 326912
    %76 = vst.msk [vmem:[#allocation0] sm:$0x1] %vm75, %v74
    %s77 = scalar_lea.vmem %s0, 3
    %v78 = vld [vmem:[%s77] sm:$0x1]
    %79 = vrot.lane.b32.xlu0 %v78, 24
    %v80 = vpop.permute.xlu0 %79
    %vm81 = vcmask 261312
    %82 = vst.msk [vmem:[#allocation0] sm:$0x1] %vm81, %v80
    %s83 = scalar_lea.vmem %s0, 2
    %v84 = vld [vmem:[%s83] sm:$0x1]
    %85 = vrot.lane.b32.xlu0 %v84, 16
    %v86 = vpop.permute.xlu0 %85
    %vm87 = vcmask 195712
    %88 = vst.msk [vmem:[#allocation0] sm:$0x1] %vm87, %v86
    %s89 = scalar_lea.vmem %s0, 1
    %v90 = vld [vmem:[%s89] sm:$0x1]
    %91 = vrot.lane.b32.xlu0 %v90, 8
    %v92 = vpop.permute.xlu0 %91
    %vm93 = vcmask 130112
    %94 = vst.msk [vmem:[#allocation0] sm:$0x1] %vm93, %v92
    %s96 = sshllo.u32 0, 1
    %v98 = vld [vmem:[#allocation0] sm:%s96]
    %s99 = sshllo.u32 0, 1
    %100 = vst [vmem:[%s1] sm:%s99] %v98

// kernel: convcc5_pallas.1
$region0: #{convcc5_pallas.1}
  #allocation0 [shape = 'u32[]', space=smem, size = 0x4, offset = 0x4, fixed_abs, tag = 'smem constant byte address 0x4 - core index']
  #allocation1 [shape = 'u32[144,128]{1,0:T(1,128)}', space=vmem, size = 0x12000, scoped, tag = 'internal scratch']
  #allocation2 [shape = 'f32[16,320]{1,0:T(8,128)}', space=vmem, size = 0x6000, scoped, tag = 'scratch operand']
  %s0 = inlined_call_operand.vmem [shape: f32[2,16,64], index: 0, kind: input, shape index: {}]
  %s1 = inlined_call_operand.vmem [shape: f32[320,128], index: 1, kind: input, shape index: {}]
  %s2 = inlined_call_operand.vmem [shape: f32[1,128], index: 2, kind: input, shape index: {}]
  %s3 = inlined_call_operand.vmem [shape: f32[2,16,128], index: 3, kind: output, shape index: {}]
  %s4 = sld [smem:[#allocation0]]
  $region45: #{convcc5_pallas.1} parent=0
    _
  %s6 = ssub.s32 1, %s4
  %s7 = scalar_select 0, %s6, %s4
  loop: start=0, step=1, limit=4
  $region2: #{convcc5_pallas.1} parent=0 // loop_pre_header
    _
  $region3: #{convcc5_pallas.1} parent=0 // loop_header
    %s9 = sphi 0, %s13
    %p10 = scmp.ge.s32.totalorder %s9, 4
    %s19 = sphi 0, %s21
    %s22 = sphi 0, %s19
    %s23 = sphi 0, %s22
    %s39 = sphi 0, %s23
    %s43 = sphi 0, %s43
    %s45 = sphi 0, %s43
    %s46 = sphi 0, %s45
    %s60 = sphi 0, %s46
    %s64 = sphi 0, %s64
    %s66 = sphi 0, %s64
    %s67 = sphi 0, %s66
    %s81 = sphi 0, %s67
    %s87 = sphi 0, %s89
    %s90 = sphi 0, %s87
    %s91 = sphi 0, %s90
    %s107 = sphi 0, %s91
  $region4: #{convcc5_pallas.1} parent=0 // loop_header_branch
    %12 = sbr.rel (%p10) target = $region8
  $region5: #{convcc5_pallas.1} parent=0 // loop_body
    %s14 = ssub.s32 %s9, 1
    %s15 = ssub.s32 %s9, 2
    %s16 = sadd.s32 %s9, 1
    %s17 = ssub.s32 %s9, %s16
    %p18 = scmp.eq.s32.totalorder %s17, 0
    %s20 = sadd.s32 %s19, 1
    %s21 = scalar_select %p18, %s19, %s20
    %p24 = pneg %p18
    %p25 = scmp.eq.s32.totalorder %s9, 1
    %p26 = por %p24, %p25
    %p27 = scmp.ne.s32.totalorder %s19, %s22
    %p28 = scmp.eq.s32.totalorder %s9, 0
    %p29 = por %p27, %p28
    %p30 = scmp.ne.s32.totalorder %s19, %s22
    %p31 = scmp.eq.s32.totalorder %s14, 1
    %p32 = por %p30, %p31
    %p33 = scmp.ne.s32.totalorder %s22, %s23
    %p34 = scmp.eq.s32.totalorder %s14, 0
    %p35 = por %p33, %p34
    %p36 = scmp.ne.s32.totalorder %s22, %s23
    %p37 = scmp.eq.s32.totalorder %s15, 1
    %p38 = por %p36, %p37
    %p40 = scmp.ne.s32.totalorder %s23, %s39
    %p41 = scmp.eq.s32.totalorder %s15, 0
    %p42 = por %p40, %p41
    %s44 = sadd.s32 %s43, 1
    %p47 = scmp.eq.s32.totalorder %s9, 1
    %p48 = scmp.ne.s32.totalorder %s43, %s45
    %p49 = scmp.eq.s32.totalorder %s9, 0
    %p50 = por %p48, %p49
    %p51 = scmp.ne.s32.totalorder %s43, %s45
    %p52 = scmp.eq.s32.totalorder %s14, 1
    %p53 = por %p51, %p52
    %p54 = scmp.ne.s32.totalorder %s45, %s46
    %p55 = scmp.eq.s32.totalorder %s14, 0
    %p56 = por %p54, %p55
    %p57 = scmp.ne.s32.totalorder %s45, %s46
    %p58 = scmp.eq.s32.totalorder %s15, 1
    %p59 = por %p57, %p58
    %p61 = scmp.ne.s32.totalorder %s46, %s60
    %p62 = scmp.eq.s32.totalorder %s15, 0
    %p63 = por %p61, %p62
    %s65 = sadd.s32 %s64, 1
    %p68 = scmp.eq.s32.totalorder %s9, 1
    %p69 = scmp.ne.s32.totalorder %s64, %s66
    %p70 = scmp.eq.s32.totalorder %s9, 0
    %p71 = por %p69, %p70
    %p72 = scmp.ne.s32.totalorder %s64, %s66
    %p73 = scmp.eq.s32.totalorder %s14, 1
    %p74 = por %p72, %p73
    %p75 = scmp.ne.s32.totalorder %s66, %s67
    %p76 = scmp.eq.s32.totalorder %s14, 0
    %p77 = por %p75, %p76
    %p78 = scmp.ne.s32.totalorder %s66, %s67
    %p79 = scmp.eq.s32.totalorder %s15, 1
    %p80 = por %p78, %p79
    %p82 = scmp.ne.s32.totalorder %s67, %s81
    %p83 = scmp.eq.s32.totalorder %s15, 0
    %p84 = por %p82, %p83
    %s85 = ssub.s32 %s9, %s16
    %p86 = scmp.eq.s32.totalorder %s85, 0
    %s88 = sadd.s32 %s87, 1
    %s89 = scalar_select %p86, %s87, %s88
    %p92 = pneg %p86
    %p93 = scmp.eq.s32.totalorder %s9, 1
    %p94 = por %p92, %p93
    %p95 = scmp.ne.s32.totalorder %s87, %s90
    %p96 = scmp.eq.s32.totalorder %s9, 0
    %p97 = por %p95, %p96
    %p98 = scmp.ne.s32.totalorder %s87, %s90
    %p99 = scmp.eq.s32.totalorder %s14, 1
    %p100 = por %p98, %p99
    %p101 = scmp.ne.s32.totalorder %s90, %s91
    %p102 = scmp.eq.s32.totalorder %s14, 0
    %p103 = por %p101, %p102
    %p104 = scmp.ne.s32.totalorder %s90, %s91
    %p105 = scmp.eq.s32.totalorder %s15, 1
    %p106 = por %p104, %p105
    %p108 = scmp.ne.s32.totalorder %s91, %s107
    %p109 = scmp.eq.s32.totalorder %s15, 0
    %p110 = por %p108, %p109
    %p111 = scmp.le.s32.totalorder 1, %s9
    %p112 = scmp.lt.s32.totalorder %s9, 3
    %p113 = pnand %p111, %p112
    %p114 = pneg %p113
    // Predicated region
    $region9: #{convcc5_pallas.1} parent=5 // pred_check
      _
    $region10: #{convcc5_pallas.1} parent=5 // pred_check_branch
      %116 = sbr.rel (%p113) target = $region12
    $region11: #{convcc5_pallas.1} parent=5 // pred_region
      %s117 = ssub.s32 %s9, 1
      // Predicated region
      $region13: #{convcc5_pallas.1} parent=11 // pred_check
        %p118 = pneg %p56
      $region14: #{convcc5_pallas.1} parent=11 // pred_check_branch
        %120 = sbr.rel (%p118) target = $region16
      $region15: #{convcc5_pallas.1} parent=11 // pred_region
        _
      $region16: #{convcc5_pallas.1} parent=11 // pred_fallthru
        _
      // Predicated region
      $region17: #{convcc5_pallas.1} parent=11 // pred_check
        %p121 = pneg %p77
      $region18: #{convcc5_pallas.1} parent=11 // pred_check_branch
        %123 = sbr.rel (%p121) target = $region20
      $region19: #{convcc5_pallas.1} parent=11 // pred_region
        _
      $region20: #{convcc5_pallas.1} parent=11 // pred_fallthru
        _
    $region12: #{convcc5_pallas.1} parent=5 // pred_fallthru
      _
    %p124 = scmp.lt.s32.totalorder %s9, 2
    // Predicated region
    $region21: #{convcc5_pallas.1} parent=5 // pred_check
      %p125 = pneg %p124
    $region22: #{convcc5_pallas.1} parent=5 // pred_check_branch
      %127 = sbr.rel (%p125) target = $region24
    $region23: #{convcc5_pallas.1} parent=5 // pred_region
      // Predicated region
      $region25: #{convcc5_pallas.1} parent=23 // pred_check
        %p128 = pneg %p29
      $region26: #{convcc5_pallas.1} parent=23 // pred_check_branch
        %130 = sbr.rel (%p128) target = $region28
      $region27: #{convcc5_pallas.1} parent=23 // pred_region
        %p131 = scmp.lt.s32.totalorder %s9, 1
        %s132 = scalar_select %p131, %s9, 1
        %s133 = smul.addr %s132, 2
        %s134 = smul.addr %s133, 8
        %s135 = scalar_lea.vmem %s0, %s134
      $region28: #{convcc5_pallas.1} parent=23 // pred_fallthru
        _
    $region24: #{convcc5_pallas.1} parent=5 // pred_fallthru
      _
    %p136 = scmp.le.s32.totalorder 1, %s9
    %p137 = scmp.lt.s32.totalorder %s9, 3
    %p138 = pnand %p136, %p137
    %p139 = pneg %p138
    // Predicated region
    $region29: #{convcc5_pallas.1} parent=5 // pred_check
      _
    $region30: #{convcc5_pallas.1} parent=5 // pred_check_branch
      %141 = sbr.rel (%p138) target = $region32
    $region31: #{convcc5_pallas.1} parent=5 // pred_region
      %s142 = ssub.s32 %s9, 1
      %p143 = scmp.lt.s32.totalorder %s14, 1
      %s144 = scalar_select %p143, %s14, 1
      %s145 = smul.addr %s144, 2
      %s146 = smul.addr %s145, 8
      %s147 = scalar_lea.vmem %s0, %s146
      %p148 = pneg %p35
      %p149 = pneg %p32
      %p150 = pneg %p56
      %p151 = pneg %p53
      %p152 = pneg %p77
      %p153 = pneg %p74
      %p154 = pneg %p103
      %p155 = pneg %p100
      %p156 = scmp.lt.s32.totalorder %s14, 1
      %s157 = scalar_select %p156, %s14, 1
      %s158 = smul.addr %s157, 2
      %s159 = smul.addr %s158, 8
      %s160 = scalar_lea.vmem %s3, %s159
      %p161 = scmp.lt.s32.totalorder %s14, 1
      %s162 = scalar_select %p161, %s14, 1
      %s163 = smul.addr %s162, 2
      %s164 = smul.addr %s163, 8
      %s165 = scalar_lea.vmem %s0, %s164
      %p166 = scmp.lt.s32.totalorder %s14, 1
      %s167 = scalar_select %p166, %s14, 1
      %s168 = smul.addr %s167, 2
      %s169 = smul.addr %s168, 8
      %s170 = scalar_lea.vmem %s3, %s169
      %171 = vst [vmem:[#allocation2] sm:$0xff] 0.0
      %172 = vst [vmem:[#allocation2 + $0x8] sm:$0xff] 0.0
      %vm173 = vcmask 523264
      %174 = vst.msk [vmem:[#allocation2 + $0x10] sm:$0xff] %vm173, 0.0
      %175 = vst [vmem:[#allocation2 + $0x18] sm:$0xff] 0.0
      %176 = vst [vmem:[#allocation2 + $0x20] sm:$0xff] 0.0
      %177 = vst.msk [vmem:[#allocation2 + $0x28] sm:$0xff] %vm173, 0.0
      %v178 = vld [vmem:[%s165] sm:$0xff]
      %v179 = vld [vmem:[%s165 + $0x8] sm:$0x3f]
      %vm182 = vcmask 1041408
      %v183 = vrot.slane %v178, 6
      %v184 = vrot.slane %v179, 6
      %v185 = vsel %vm182, %v183, %v184
      %vm188 = vcmask 523266
      %189 = vst.msk [vmem:[#allocation2] sm:$0xfc] %vm188, %v183
      %190 = vst.msk [vmem:[#allocation2 + $0x18] sm:$0xff] %vm173, %v185
      %v191 = vld [vmem:[%s165] sm:$0xff]
      %v192 = vld [vmem:[%s165 + $0x8] sm:$0x7f]
      %vm195 = vcmask 1040384
      %v196 = vrot.slane %v191, 7
      %v197 = vrot.slane %v192, 7
      %v198 = vsel %vm195, %v196, %v197
      %199 = vrot.lane.b32.xlu0 %v196, 64
      %v200 = vpop.permute.xlu0 %199
      %201 = vrot.lane.b32.xlu0 %v198, 64
      %v202 = vpop.permute.xlu0 %201
      %vm205 = vcmask 1048065
      %206 = vst.msk [vmem:[#allocation2] sm:$0xfe] %vm205, %v200
      %vm207 = vcmask 1048064
      %208 = vst.msk [vmem:[#allocation2 + $0x18] sm:$0xff] %vm207, %v202
      %v209 = vld [vmem:[%s165] sm:$0xff]
      %v210 = vld [vmem:[%s165 + $0x8] sm:$0xff]
      %211 = vst.msk [vmem:[#allocation2 + $0x8] sm:$0xff] %vm173, %v209
      %212 = vst.msk [vmem:[#allocation2 + $0x20] sm:$0xff] %vm173, %v210
      %v213 = vld [vmem:[%s165 + $0x1] sm:$0xff]
      %v214 = vld [vmem:[%s165 + $0x9] sm:$0x7f]
      %217 = vrot.lane.b32.xlu0 %v213, 64
      %v218 = vpop.permute.xlu0 %217
      %219 = vrot.lane.b32.xlu0 %v214, 64
      %v220 = vpop.permute.xlu0 %219
      %223 = vst.msk [vmem:[#allocation2 + $0x8] sm:$0xff] %vm207, %v218
      %vm224 = vcmask 1047040
      %225 = vst.msk [vmem:[#allocation2 + $0x20] sm:$0x7f] %vm224, %v220
      %v226 = vld [vmem:[%s165 + $0x2] sm:$0xff]
      %v227 = vld [vmem:[%s165 + $0xa] sm:$0x3f]
      %228 = vst.msk [vmem:[#allocation2 + $0x10] sm:$0xff] %vm173, %v226
      %vm229 = vcmask 521216
      %230 = vst.msk [vmem:[#allocation2 + $0x28] sm:$0x3f] %vm229, %v227
      %v231 = vld [vmem:[#allocation2] sm:$0xff]
      %v232 = vld [vmem:[#allocation2 + $0x8] sm:$0xff]
      %v233 = vld [vmem:[#allocation2 + $0x10] sm:$0xff]
      %v234 = vld [vmem:[#allocation2 + $0x18] sm:$0xff]
      %v235 = vld [vmem:[#allocation2 + $0x20] sm:$0xff]
      %v236 = vld [vmem:[#allocation2 + $0x28] sm:$0xff]
      %v237 = vld [vmem:[%s1] sm:$0xff]
      %v238 = vld [vmem:[%s1 + $0x8] sm:$0xff]
      %v239 = vld [vmem:[%s1 + $0x10] sm:$0xff]
      %v240 = vld [vmem:[%s1 + $0x18] sm:$0xff]
      %v241 = vld [vmem:[%s1 + $0x20] sm:$0xff]
      %v242 = vld [vmem:[%s1 + $0x28] sm:$0xff]
      %v243 = vld [vmem:[%s1 + $0x30] sm:$0xff]
      %v244 = vld [vmem:[%s1 + $0x38] sm:$0xff]
      %v245 = vld [vmem:[%s1 + $0x40] sm:$0xff]
      %v246 = vld [vmem:[%s1 + $0x48] sm:$0xff]
      %v247 = vld [vmem:[%s1 + $0x50] sm:$0xff]
      %v248 = vld [vmem:[%s1 + $0x58] sm:$0xff]
      %v249 = vld [vmem:[%s1 + $0x60] sm:$0xff]
      %v250 = vld [vmem:[%s1 + $0x68] sm:$0xff]
      %v251 = vld [vmem:[%s1 + $0x70] sm:$0xff]
      %v252 = vld [vmem:[%s1 + $0x78] sm:$0xff]
      %v253 = vld [vmem:[%s1 + $0x80] sm:$0xff]
      %v254 = vld [vmem:[%s1 + $0x88] sm:$0xff]
      %v255 = vld [vmem:[%s1 + $0x90] sm:$0xff]
      %v256 = vld [vmem:[%s1 + $0x98] sm:$0xff]
      %v257 = vld [vmem:[%s1 + $0xa0] sm:$0xff]
      %v258 = vld [vmem:[%s1 + $0xa8] sm:$0xff]
      %v259 = vld [vmem:[%s1 + $0xb0] sm:$0xff]
      %v260 = vld [vmem:[%s1 + $0xb8] sm:$0xff]
      %v261 = vld [vmem:[%s1 + $0xc0] sm:$0xff]
      %v262 = vld [vmem:[%s1 + $0xc8] sm:$0xff]
      %v263 = vld [vmem:[%s1 + $0xd0] sm:$0xff]
      %v264 = vld [vmem:[%s1 + $0xd8] sm:$0xff]
      %v265 = vld [vmem:[%s1 + $0xe0] sm:$0xff]
      %v266 = vld [vmem:[%s1 + $0xe8] sm:$0xff]
      %v267 = vld [vmem:[%s1 + $0xf0] sm:$0xff]
      %v268 = vld [vmem:[%s1 + $0xf8] sm:$0xff]
      %v269 = vld [vmem:[%s1 + $0x100] sm:$0xff]
      %v270 = vld [vmem:[%s1 + $0x108] sm:$0xff]
      %v271 = vld [vmem:[%s1 + $0x110] sm:$0xff]
      %v272 = vld [vmem:[%s1 + $0x118] sm:$0xff]
      %v273 = vld [vmem:[%s1 + $0x120] sm:$0xff]
      %v274 = vld [vmem:[%s1 + $0x128] sm:$0xff]
      %v275 = vld [vmem:[%s1 + $0x130] sm:$0xff]
      %v276 = vld [vmem:[%s1 + $0x138] sm:$0xff]
      %v277 = vld [vmem:[%s2] sm:$0x1]
      %v279 = vlaneseq
      %v280 = vshrl.u32 %v279, 7
      %v281 = vsub.s32 0, %v280
      %v282 = vrot.slane %v277, %v281
      %v285 = vsel %vm173, %v233, 0
      %v288 = vsel %vm173, %v236, 0
      %290 = vmatprep.subr.mxu0 0.0
      %291 = vmatpush1.msra.mxu0 %v237
      %292 = vmatprep.subr.mxu0 0.0
      %293 = vmatpush1.msra.mxu0 %v238
      %294 = vmatprep.subr.mxu0 0.0
      %295 = vmatpush1.msra.mxu0 %v239
      %296 = vmatprep.subr.mxu0 0.0
      %297 = vmatpush1.msra.mxu0 %v240
      %298 = vmatprep.subr.mxu0 0.0
      %299 = vmatpush1.msra.mxu0 %v241
      %300 = vmatprep.subr.mxu0 0.0
      %301 = vmatpush1.msra.mxu0 %v242
      %302 = vmatprep.subr.mxu0 0.0
      %303 = vmatpush1.msra.mxu0 %v243
      %304 = vmatprep.subr.mxu0 0.0
      %305 = vmatpush1.msra.mxu0 %v244
      %306 = vmatprep.subr.mxu0 0.0
      %307 = vmatpush1.msra.mxu0 %v245
      %308 = vmatprep.subr.mxu0 0.0
      %309 = vmatpush1.msra.mxu0 %v246
      %310 = vmatprep.subr.mxu0 0.0
      %311 = vmatpush1.msra.mxu0 %v247
      %312 = vmatprep.subr.mxu0 0.0
      %313 = vmatpush1.msra.mxu0 %v248
      %314 = vmatprep.subr.mxu0 0.0
      %315 = vmatpush1.msra.mxu0 %v249
      %316 = vmatprep.subr.mxu0 0.0
      %317 = vmatpush1.msra.mxu0 %v250
      %318 = vmatprep.subr.mxu0 0.0
      %319 = vmatpush1.msra.mxu0 %v251
      %320 = vmatprep.subr.mxu0 0.0
      %321 = vmatpush1.msra.mxu0 %v252
      %322 = vmatprep.subr.mxu0 0.0
      %323 = vmatpush1.msra.mxu0 %v253
      %324 = vmatprep.subr.mxu0 0.0
      %325 = vmatpush1.msra.mxu0 %v254
      %326 = vmatprep.subr.mxu0 0.0
      %327 = vmatpush1.msra.mxu0 %v255
      %328 = vmatprep.subr.mxu0 0.0
      %329 = vmatpush1.msra.mxu0 %v256
      %330 = vmatprep.subr.mxu0 0.0
      %331 = vmatpush1.msra.mxu0 %v257
      %332 = vmatprep.subr.mxu0 0.0
      %333 = vmatpush1.msra.mxu0 %v258
      %334 = vmatprep.subr.mxu0 0.0
      %335 = vmatpush1.msra.mxu0 %v259
      %336 = vmatprep.subr.mxu0 0.0
      %337 = vmatpush1.msra.mxu0 %v260
      %338 = vmatprep.subr.mxu0 0.0
      %339 = vmatpush1.msra.mxu0 %v261
      %340 = vmatprep.subr.mxu0 0.0
      %341 = vmatpush1.msra.mxu0 %v262
      %342 = vmatprep.subr.mxu0 0.0
      %343 = vmatpush1.msra.mxu0 %v263
      %344 = vmatprep.subr.mxu0 0.0
      %345 = vmatpush1.msra.mxu0 %v264
      %346 = vmatprep.subr.mxu0 0.0
      %347 = vmatpush1.msra.mxu0 %v265
      %348 = vmatprep.subr.mxu0 0.0
      %349 = vmatpush1.msra.mxu0 %v266
      %350 = vmatprep.subr.mxu0 0.0
      %351 = vmatpush1.msra.mxu0 %v267
      %352 = vmatprep.subr.mxu0 0.0
      %353 = vmatpush1.msra.mxu0 %v268
      %354 = vmatprep.mubr.f32.mxu0 %v232
      %355 = vmatmul.mubr.f32.gmra.mrb[0].mxu0 %v231
      %v356 = vpop.f32.mrb[0].mxu0
      %v357 = vadd.f32 %v282, %v356
      %v358 = vpop.f32.mrb[0].mxu0
      %359 = vmatprep.mubr.f32.mxu0 %v235
      %360 = vmatmul.mubr.f32.gmra.mrb[0].mxu0 %v234
      %v361 = vpop.f32.mrb[0].mxu0
      %v362 = vadd.f32 %v282, %v361
      %v363 = vpop.f32.mrb[0].mxu0
      %364 = vdwg.mxu0
      %365 = vmatprep.subr.mxu0 0.0
      %366 = vmatpush1.msra.mxu0 %v269
      %367 = vmatprep.subr.mxu0 0.0
      %368 = vmatpush1.msra.mxu0 %v270
      %369 = vmatprep.subr.mxu0 0.0
      %370 = vmatpush1.msra.mxu0 %v271
      %371 = vmatprep.subr.mxu0 0.0
      %372 = vmatpush1.msra.mxu0 %v272
      %373 = vmatprep.subr.mxu0 0.0
      %374 = vmatpush1.msra.mxu0 %v273
      %375 = vmatprep.subr.mxu0 0.0
      %376 = vmatpush1.msra.mxu0 %v274
      %377 = vmatprep.subr.mxu0 0.0
      %378 = vmatpush1.msra.mxu0 %v275
      %379 = vmatprep.subr.mxu0 0.0
      %380 = vmatpush1.msra.mxu0 %v276
      %381 = vmatprep.subr.mxu0 0.0
      %382 = vmatpush1.msra.mxu0 0.0
      %383 = vmatprep.subr.mxu0 0.0
      %384 = vmatpush1.msra.mxu0 0.0
      %385 = vmatprep.subr.mxu0 0.0
      %386 = vmatpush1.msra.mxu0 0.0
      %387 = vmatprep.subr.mxu0 0.0
      %388 = vmatpush1.msra.mxu0 0.0
      %389 = vmatprep.subr.mxu0 0.0
      %390 = vmatpush1.msra.mxu0 0.0
      %391 = vmatprep.subr.mxu0 0.0
      %392 = vmatpush1.msra.mxu0 0.0
      %393 = vmatprep.subr.mxu0 0.0
      %394 = vmatpush1.msra.mxu0 0.0
      %395 = vmatprep.subr.mxu0 0.0
      %396 = vmatpush1.msra.mxu0 0.0
      %397 = vmatprep.subr.mxu0 0.0
      %398 = vmatpush1.msra.mxu0 0.0
      %399 = vmatprep.subr.mxu0 0.0
      %400 = vmatpush1.msra.mxu0 0.0
      %401 = vmatprep.subr.mxu0 0.0
      %402 = vmatpush1.msra.mxu0 0.0
      %403 = vmatprep.subr.mxu0 0.0
      %404 = vmatpush1.msra.mxu0 0.0
      %405 = vmatprep.subr.mxu0 0.0
      %406 = vmatpush1.msra.mxu0 0.0
      %407 = vmatprep.subr.mxu0 0.0
      %408 = vmatpush1.msra.mxu0 0.0
      %409 = vmatprep.subr.mxu0 0.0
      %410 = vmatpush1.msra.mxu0 0.0
      %411 = vmatprep.subr.mxu0 0.0
      %412 = vmatpush1.msra.mxu0 0.0
      %413 = vmatprep.subr.mxu0 0.0
      %414 = vmatpush1.msra.mxu0 0.0
      %415 = vmatprep.subr.mxu0 0.0
      %416 = vmatpush1.msra.mxu0 0.0
      %417 = vmatprep.subr.mxu0 0.0
      %418 = vmatpush1.msra.mxu0 0.0
      %419 = vmatprep.subr.mxu0 0.0
      %420 = vmatpush1.msra.mxu0 0.0
      %421 = vmatprep.subr.mxu0 0.0
      %422 = vmatpush1.msra.mxu0 0.0
      %423 = vmatprep.subr.mxu0 0.0
      %424 = vmatpush1.msra.mxu0 0.0
      %425 = vmatprep.subr.mxu0 0.0
      %426 = vmatpush1.msra.mxu0 0.0
      %427 = vmatprep.subr.mxu0 0.0
      %428 = vmatpush1.msra.mxu0 0.0
      %429 = vmatprep.mubr.f32.mxu0 0.0
      %430 = vmatmul.mubr.f32.gmra.mrb[0].mxu0 %v285
      %v431 = vpop.f32.mrb[0].mxu0
      %v432 = vadd.f32 %v357, %v431
      %v433 = vpop.f32.mrb[0].mxu0
      %434 = vmatprep.mubr.f32.mxu0 0.0
      %435 = vmatmul.mubr.f32.gmra.mrb[0].mxu0 %v288
      %v436 = vpop.f32.mrb[0].mxu0
      %v437 = vadd.f32 %v362, %v436
      %v438 = vpop.f32.mrb[0].mxu0
      %439 = vdwg.mxu0
      %440 = vst [vmem:[%s170] sm:$0xff] %v432
      %441 = vst [vmem:[%s170 + $0x8] sm:$0xff] %v437
      %p442 = scmp.lt.s32.totalorder %s14, 1
      %s443 = scalar_select %p442, %s14, 1
      %s444 = smul.addr %s443, 2
      %s445 = smul.addr %s444, 8
      %s446 = scalar_lea.vmem %s3, %s445
      // Predicated region
      $region33: #{convcc5_pallas.1} parent=31 // pred_check
        %p447 = pneg %p100
      $region34: #{convcc5_pallas.1} parent=31 // pred_check_branch
        %449 = sbr.rel (%p447) target = $region36
      $region35: #{convcc5_pallas.1} parent=31 // pred_region
        _
      $region36: #{convcc5_pallas.1} parent=31 // pred_fallthru
        _
    $region32: #{convcc5_pallas.1} parent=5 // pred_fallthru
      _
    %p450 = scmp.le.s32.totalorder 2, %s9
    // Predicated region
    $region37: #{convcc5_pallas.1} parent=5 // pred_check
      %p451 = pneg %p450
    $region38: #{convcc5_pallas.1} parent=5 // pred_check_branch
      %453 = sbr.rel (%p451) target = $region40
    $region39: #{convcc5_pallas.1} parent=5 // pred_region
      %s454 = ssub.s32 %s9, 2
      // Predicated region
      $region41: #{convcc5_pallas.1} parent=39 // pred_check
        %p455 = pneg %p106
      $region42: #{convcc5_pallas.1} parent=39 // pred_check_branch
        %457 = sbr.rel (%p455) target = $region44
      $region43: #{convcc5_pallas.1} parent=39 // pred_region
        %p458 = scmp.lt.s32.totalorder %s15, 1
        %s459 = scalar_select %p458, %s15, 1
        %s460 = smul.addr %s459, 2
        %s461 = smul.addr %s460, 8
        %s462 = scalar_lea.vmem %s3, %s461
      $region44: #{convcc5_pallas.1} parent=39 // pred_fallthru
        _
    $region40: #{convcc5_pallas.1} parent=5 // pred_fallthru
      _
  $region6: #{convcc5_pallas.1} parent=0 // loop_footer
    %s13 = sadd.s32 1, %s9
  $region7: #{convcc5_pallas.1} parent=0 // loop_footer_branch
    %8 = sbr.rel target = $region3
  $region8: #{convcc5_pallas.1} parent=0 // loop_exit
    _

</llo_original>
